<compile_context>
chip_gen: v5e
topology: v5e:2x2
jax: 0.10.0
libtpu: 0.0.40
codegen_flags: <defaults>
</compile_context>

<pallas_src>
import functools

import jax
import jax.numpy as jnp
from jax.experimental import pallas as pl
from jax.experimental.pallas import tpu as pltpu


def _round_up(x: int, m: int) -> int:
    return -(-x // m) * m


def _copy_kernel(x_ref, o_ref):
    # Input block already contains exactly the kept prefix: straight copy.
    o_ref[...] = x_ref[...]


def _copy_prefix_kernel(n_keep, x_ref, o_ref):
    # x_ref: (r_blk, fetch) VMEM tile with fetch >= n_keep; keep prefix only.
    o_ref[...] = x_ref[:, :n_keep]


def _physical_vmem_bytes() -> int:
    """Physical VMEM per TensorCore; conservative fallback if query fails."""
    try:
        info = pltpu.get_tpu_info()
        v = getattr(info, "vmem_capacity_bytes", None)
        if v:
            return int(v)
    except Exception:
        pass
    return 64 << 20  # v7x per-TC VMEM (smallest current generation)


def _pick_row_block(N: int, per_row_pipeline_bytes: int, itemsize: int,
                    budget_bytes: int) -> int:
    """Row-block size: sublane aligned, fits the VMEM pipeline budget, and
    (when possible) leaves >=2 grid steps so the parallel axis can shard
    across v7x's two TensorCores."""
    sub = max(8, 32 // itemsize)  # sublane tile: 8 f32, 16 bf16, 32 int8
    if N <= sub:
        return N  # block == full second-to-last dim: always legal
    # Largest sublane-aligned block whose double-buffered footprint fits.
    max_rows = max(sub,
                   (budget_bytes // max(per_row_pipeline_bytes, 1)) // sub * sub)
    # Cap at ~half the rows (rounded up to the sublane tile) so the grid has
    # at least two steps for megacore sharding on v7x.
    half_aligned = max(sub, _round_up(-(-N // 2), sub))
    return min(max_rows, half_aligned, _round_up(N, sub))


def slice_forward(x: jax.Array, a: int) -> jax.Array:
    """Pallas equivalent of PyTorch x[:, :, :-a] for a 4D NCHW tensor."""
    assert a > 0
    B, C, H, W = x.shape
    H_out = H - a
    assert H_out > 0

    n_full = H * W
    n_keep = H_out * W
    N = B * C
    itemsize = jnp.dtype(x.dtype).itemsize

    # Flatten (B, C) -> N rows and (H, W) -> H*W lanes: the kept H-prefix is
    # a contiguous, lane-dense prefix of the trailing dim.
    x2 = x.reshape(N, n_full)

    # Fetch only a 128-lane-aligned superset of the kept prefix (clamped to
    # the full row).  If it matches exactly, the kernel is a straight copy.
    fetch = min(_round_up(n_keep, 128), n_full)
    if fetch == n_keep:
        kernel = _copy_kernel
    else:
        kernel = functools.partial(_copy_prefix_kernel, n_keep)

    # Tile budget: ~30% of physical VMEM for the double-buffered pipeline
    # footprint 2 * (in_tile + out_tile).
    physical_vmem = _physical_vmem_bytes()
    budget_bytes = max(8 << 20, int(0.30 * physical_vmem))
    per_row_pipeline = 2 * (fetch + n_keep) * itemsize
    r_blk = _pick_row_block(N, per_row_pipeline, itemsize, budget_bytes)
    grid = (pl.cdiv(N, r_blk),)

    # Scoped-VMEM limit covering the chosen tiles plus headroom (v5e default
    # is only 16 MiB), clamped below physical VMEM (64 MiB on v7x).
    needed_bytes = 2 * r_blk * (fetch + n_keep) * itemsize
    vmem_limit = min(int(0.9 * physical_vmem),
                     max(needed_bytes + (4 << 20), 32 << 20))

    in_bytes = N * fetch * itemsize
    out_bytes = N * n_keep * itemsize

    out2 = pl.pallas_call(
        kernel,
        out_shape=jax.ShapeDtypeStruct((N, n_keep), x.dtype),
        grid_spec=pltpu.PrefetchScalarGridSpec(
            num_scalar_prefetch=0,
            grid=grid,
            in_specs=[pl.BlockSpec((r_blk, fetch), lambda i: (i, 0))],
            out_specs=pl.BlockSpec((r_blk, n_keep), lambda i: (i, 0)),
        ),
        compiler_params=pltpu.CompilerParams(
            dimension_semantics=("parallel",),
            vmem_limit_bytes=vmem_limit,
        ),
        cost_estimate=pl.CostEstimate(
            flops=0, transcendentals=0, bytes_accessed=in_bytes + out_bytes),
    )(x2)

    return out2.reshape(B, C, H_out, W)


if __name__ == "__main__":
    key = jax.random.PRNGKey(0)
    B, C, H, W = 2, 4, 16, 16
    a = 4  # slice parameter from Slice(a)

    x = jax.random.normal(key, (B, C, H, W), dtype=jnp.float32)

    out = slice_forward(x, a)
    out = jax.block_until_ready(out)

    # Verify against plain JAX reference (same semantics as x[:, :, :-a]).
    ref = x[:, :, :-a]
    assert out.shape == (B, C, H - a, W), out.shape
    assert out.dtype == x.dtype
    assert jnp.array_equal(out, ref)

    print("KERNEL_OK")
</pallas_src>

<mosaic_0001>
module attributes {stable_mosaic.version = 11 : i64} {
  func.func @_copy_prefix_kernel(%arg0: i32, %arg1: memref<8x256xf32, #tpu.memory_space<vmem>>, %arg2: memref<8x192xf32, #tpu.memory_space<vmem>>) attributes {dimension_semantics = [#tpu.dimension_semantics<parallel>], iteration_bounds = array<i64: 1>, scalar_prefetch = 0 : i64, scratch_operands = 0 : i64, tpu.core_type = #tpu.core_type<tc>, window_params = [{transform_indices = @transform_0, window_bounds = array<i64: 8, 256>}, {transform_indices = @transform_1, window_bounds = array<i64: 8, 192>}]} {
    %c0 = arith.constant 0 : index
    %c0_0 = arith.constant 0 : index
    %0 = vector.load %arg1[%c0, %c0_0] : memref<8x256xf32, #tpu.memory_space<vmem>>, vector<8x192xf32>
    %c0_1 = arith.constant 0 : index
    %c0_2 = arith.constant 0 : index
    %1 = vector.load %arg2[%c0_1, %c0_2] : memref<8x192xf32, #tpu.memory_space<vmem>>, vector<8x192xf32>
    tpu.vector_store %arg2[%c0_1, %c0_2], %0 {strides = array<i32>} : memref<8x192xf32, #tpu.memory_space<vmem>>, vector<8x192xf32>,
    return
  }
  func.func @transform_0(%arg0: i32) -> (i32, i32) {
    %c0_i32 = arith.constant 0 : i32
    %c0_i32_0 = arith.constant 0 : i32
    return %arg0, %c0_i32 : i32, i32
  }
  func.func @transform_1(%arg0: i32) -> (i32, i32) {
    %c0_i32 = arith.constant 0 : i32
    %c0_i32_0 = arith.constant 0 : i32
    return %arg0, %c0_i32 : i32, i32
  }
}

</mosaic_0001>

<llo_original>
// kernel: tpu_custom_call.1
$region0: #{tpu_custom_call.1}
  #allocation0 [shape = 'u32[]', space=smem, size = 0x4, offset = 0x4, fixed_abs, tag = 'smem constant byte address 0x4 - core index']
  #allocation1 [shape = 'u32[72,128]{1,0:T(1,128)}', space=vmem, size = 0x9000, scoped, tag = 'internal scratch']
  %s0 = inlined_call_operand.hbm [shape: f32[8,256], index: 0, kind: input, shape index: {}]
  %s1 = inlined_call_operand.hbm [shape: f32[8,192], index: 1, kind: output, shape index: {}]
  %s2 = sld [smem:[#allocation0]]
  $region18: #{tpu_custom_call.1} parent=0
    _
  %s4 = ssub.s32 1, %s2
  %s5 = scalar_select 0, %s4, %s2
  $region1: #{tpu_custom_call.1} parent=0
    #allocation2 [shape = 'u8[8192]{0}', space=vmem, size = 0x2000, scoped, tag = 'input window, operand 0, single buffered']
    #allocation3 [shape = 's32[1]{0}', space=sflag, size = 0x4, scoped, tag = 'scoped memory for tpu_custom_call.1']
    #allocation4 [shape = 's32[1]{0}', space=sflag, size = 0x4, scoped, tag = 'scoped memory for tpu_custom_call.1']
    #allocation5 [shape = 'u8[8192]{0}', space=vmem, size = 0x2000, scoped, tag = 'output window, operand 0, single buffered']
    %6 = vsyncpa [#allocation3], 0
    %7 = vsyncpa [#allocation4], 0
    // Predicated region
    $region2: #{tpu_custom_call.1} parent=1 // pred_check
      _
    $region3: #{tpu_custom_call.1} parent=1 // pred_check_branch
      %9 = sbr.rel (0) target = $region5
    $region4: #{tpu_custom_call.1} parent=1 // pred_region
      %11 = vsyncadd [#allocation3], 0
      %s13 = sshll.u32 %s0, 4
      %s14 = int_to_ptr.hbm [resolvable:$true] %s13
      %s15 = sshll.u32 [#allocation2], 4
      %s16 = int_to_ptr.vmem [resolvable:$true] %s15
      %18 = dma.hbm_to_vmem [thread:$0]  %s14, 256, %s16, [#allocation3]
    $region5: #{tpu_custom_call.1} parent=1 // pred_fallthru
      _
    // Predicated region
    $region6: #{tpu_custom_call.1} parent=1 // pred_check
      _
    $region7: #{tpu_custom_call.1} parent=1 // pred_check_branch
      %20 = sbr.rel (0) target = $region9
    $region8: #{tpu_custom_call.1} parent=1 // pred_region
      %22 = dma.done [#allocation3], 256
    $region9: #{tpu_custom_call.1} parent=1 // pred_fallthru
      _
    %v23 = vld [vmem:[#allocation2] sm:$0xff]
    %v24 = vld [vmem:[#allocation2 + $0x8] sm:$0xff]
    %25 = vst [vmem:[#allocation5] sm:$0xff] %v23
    %vm26 = vcmask 523264
    %27 = vst.msk [vmem:[#allocation5 + $0x8] sm:$0xff] %vm26, %v24
    // Predicated region
    $region10: #{tpu_custom_call.1} parent=1 // pred_check
      _
    $region11: #{tpu_custom_call.1} parent=1 // pred_check_branch
      %29 = sbr.rel (0) target = $region13
    $region12: #{tpu_custom_call.1} parent=1 // pred_region
      %31 = vsyncadd [#allocation4], 0
      %s33 = sshll.u32 [#allocation5], 4
      %s34 = int_to_ptr.vmem [resolvable:$true] %s33
      %s35 = sshll.u32 %s1, 4
      %s36 = int_to_ptr.hbm [resolvable:$true] %s35
      %38 = dma.vmem_to_hbm [thread:$0]  %s34, 256, %s36, [#allocation4]
    $region13: #{tpu_custom_call.1} parent=1 // pred_fallthru
      _
    // Predicated region
    $region14: #{tpu_custom_call.1} parent=1 // pred_check
      _
    $region15: #{tpu_custom_call.1} parent=1 // pred_check_branch
      %40 = sbr.rel (0) target = $region17
    $region16: #{tpu_custom_call.1} parent=1 // pred_region
      %42 = dma.done [#allocation4], 256
    $region17: #{tpu_custom_call.1} parent=1 // pred_fallthru
      _
    %43 = vsyncpa [#allocation3], 1
    %44 = vsyncpa [#allocation4], 1

</llo_original>
